<compile_context>
chip_gen: v7x
topology: tpu7x:2x2x1
jax: 0.10.0
libtpu: 0.0.40
codegen_flags: <defaults>
</compile_context>

<pallas_src>
import jax
import jax.numpy as jnp
from jax import lax
from jax.experimental import pallas as pl
from jax.experimental.pallas import tpu as pltpu

EPS = 1e-5
KK = 7 * 7 * 3            # 147: contraction per output pixel
K2 = 2 * KK               # 294: column-pair-packed contraction
C_REAL = 64               # conv1 output channels
C_PACK = 2 * C_REAL       # 128 lanes = [64 ch of even col | 64 ch of odd col]


# ----------------------------- Pallas kernels ------------------------------ #

def _conv_stats_kernel(p_ref, w_ref, y_ref, stats_ref):
    """conv1 tile as one MXU matmul + per-tile BN partial statistics.

    p_ref:     [TP, 294]   bf16 column-pair-packed im2col patches
    w_ref:     [294, 128]  bf16 block-diagonal conv1 weights (resident)
    y_ref:     [TP, 128]   bf16 conv output (lanes = [64 even-col | 64 odd-col])
    stats_ref: [1, 2, 128] f32 partials: row 0 = sum, row 1 = centered sumsq
    """
    yf = jnp.dot(p_ref[...], w_ref[...], preferred_element_type=jnp.float32)
    y_ref[...] = yf.astype(y_ref.dtype)

    s = jnp.sum(yf, axis=0, keepdims=True)                  # (1, 128)
    mu = s * (1.0 / yf.shape[0])
    d = yf - mu
    q = jnp.sum(d * d, axis=0, keepdims=True)               # (1, 128)
    stats_ref[...] = jnp.concatenate([s, q], axis=0).reshape(1, 2, C_PACK)


def _bn_relu_pool_kernel(y_ref, scale_ref, shift_ref, o_ref):
    """Fused BN affine + ReLU + 3x3/stride-2/pad-1 max pool for one image.

    y_ref:  [1, Hp, 2, Wc, 128] bf16 conv output; axis 2 = conv-row parity,
            lanes = [64 ch of even conv col | 64 ch of odd conv col].
    scale_ref / shift_ref: [1, 128] f32 per-lane BN affine (channels duplicated
            across the two lane halves).
    o_ref:  [1, Hp, Wp, 64] f32 pooled output (Wp == Wc).
    """
    _, hp, _, wc, c2 = y_ref.shape
    c = c2 // 2

    u = y_ref[0].astype(jnp.float32)                         # (Hp, 2, Wc, 128)
    u = jnp.maximum(u * scale_ref[...] + shift_ref[...], 0.0)  # BN + ReLU (real data only)

    ev = u[:, 0]                                             # conv rows 2p     (Hp, Wc, 128)
    od = u[:, 1]                                             # conv rows 2p + 1
    zrow = jnp.zeros((1, wc, c2), jnp.float32)
    od_up = jnp.concatenate([zrow, od[:-1]], axis=0)         # conv rows 2p - 1 (zero pad)
    rm = jnp.maximum(jnp.maximum(ev, od), od_up)             # row-reduced (Hp, Wc, 128)

    a = rm[:, :, :c]                                         # even conv cols 2q
    b = rm[:, :, c:]                                         # odd  conv cols 2q + 1
    zcol = jnp.zeros((hp, 1, c), jnp.float32)
    b_left = jnp.concatenate([zcol, b[:, :-1]], axis=1)      # conv cols 2q - 1 (zero pad)
    o_ref[0] = jnp.maximum(jnp.maximum(a, b), b_left).astype(o_ref.dtype)


# --------------------------- pallas_call wrappers --------------------------- #

def _conv_stats_call(patches, wb, tile_pairs):
    m2 = patches.shape[0]
    num_tiles = m2 // tile_pairs
    cost = pl.CostEstimate(
        flops=2 * m2 * K2 * C_PACK,
        transcendentals=0,
        bytes_accessed=2 * (m2 * K2 + K2 * C_PACK + m2 * C_PACK)
        + 4 * num_tiles * 2 * C_PACK)
    return pl.pallas_call(
        _conv_stats_kernel,
        out_shape=(jax.ShapeDtypeStruct((m2, C_PACK), jnp.bfloat16),
                   jax.ShapeDtypeStruct((num_tiles, 2, C_PACK), jnp.float32)),
        grid=(num_tiles,),
        in_specs=[pl.BlockSpec((tile_pairs, K2), lambda i: (i, 0)),
                  pl.BlockSpec((K2, C_PACK), lambda i: (0, 0))],     # resident
        out_specs=(pl.BlockSpec((tile_pairs, C_PACK), lambda i: (i, 0)),
                   pl.BlockSpec((1, 2, C_PACK), lambda i: (i, 0, 0))),
        compiler_params=pltpu.CompilerParams(
            dimension_semantics=("parallel",),          # disjoint tiles -> megacore OK
            vmem_limit_bytes=48 * 1024 * 1024),
        cost_estimate=cost,
    )(patches, wb)


def _bn_relu_pool_call(y5, scale, shift):
    n, hp, _, wc, c2 = y5.shape
    c = c2 // 2
    return pl.pallas_call(
        _bn_relu_pool_kernel,
        out_shape=jax.ShapeDtypeStruct((n, hp, wc, c), jnp.float32),
        grid=(n,),
        in_specs=[pl.BlockSpec((1, hp, 2, wc, c2), lambda i: (i, 0, 0, 0, 0)),
                  pl.BlockSpec((1, c2), lambda i: (0, 0)),
                  pl.BlockSpec((1, c2), lambda i: (0, 0))],
        out_specs=pl.BlockSpec((1, hp, wc, c), lambda i: (i, 0, 0, 0)),
        compiler_params=pltpu.CompilerParams(
            dimension_semantics=("parallel",),
            vmem_limit_bytes=48 * 1024 * 1024),
    )(y5, scale, shift)


# ------------------------------ JAX glue ----------------------------------- #

def _im2col_pairs(x_nhwc, k, stride, pad):
    """7x7/s2/p3 patches packed as output-column pairs -> [N*Ho*Wo/2, 2*k*k*C]."""
    n, h, w, c = x_nhwc.shape
    ho = (h + 2 * pad - k) // stride + 1
    wo = (w + 2 * pad - k) // stride + 1
    assert wo % 2 == 0, "column-pair packing assumes even conv1 output width"
    xp = jnp.pad(x_nhwc, ((0, 0), (pad, pad), (pad, pad), (0, 0)))
    taps = [xp[:, kh:kh + stride * ho:stride, kw:kw + stride * wo:stride, :]
            for kh in range(k) for kw in range(k)]
    p = jnp.stack(taps, axis=3)                              # (N, Ho, Wo, k*k, C)
    return p.reshape(n * ho * (wo // 2), 2 * k * k * c), ho, wo


def _pick_rows_per_tile(ho, wc, max_pairs):
    """Largest divisor d of Ho with (d*Wc) % 8 == 0 and d*Wc <= max_pairs."""
    divisors = [d for d in range(1, ho + 1) if ho % d == 0]
    valid = [d for d in divisors if (d * wc) % 8 == 0]
    if not valid:
        raise ValueError(f"no sublane-aligned row tiling for Ho={ho}, Wo/2={wc}")
    fitting = [d for d in valid if d * wc <= max_pairs]
    return max(fitting) if fitting else min(valid)


def init_params(key):
    """Deterministic synthetic parameters matching ResNetBackbone.__init__."""
    conv1_w = 0.001 * jax.random.normal(key, (64, 3, 7, 7), jnp.float32)
    bn1_gamma = jnp.ones((64,), jnp.float32)
    bn1_beta = jnp.zeros((64,), jnp.float32)
    return {"conv1_w": conv1_w, "bn1_gamma": bn1_gamma, "bn1_beta": bn1_beta}


def resnet_backbone_forward(x_nchw, params, skip_early=False, max_tile_pairs=2048):
    """Default (skip_early=False) forward: conv1 -> bn1 -> relu -> maxpool."""
    if skip_early:
        # TODO(synk): layer1..layer4 residual stacks not implemented (block
        # definitions absent from the provided module).
        raise NotImplementedError("skip_early=True path not implemented")

    n = x_nchw.shape[0]
    x = jnp.transpose(x_nchw, (0, 2, 3, 1)).astype(jnp.bfloat16)   # NCHW -> NHWC bf16

    # TODO(synk): build patches per M-tile inside the conv kernel (halo DMA
    # from the raw image) instead of materializing them with XLA glue.
    patches, ho, wo = _im2col_pairs(x, k=7, stride=2, pad=3)       # [M/2, 294] bf16
    assert ho % 2 == 0 and wo % 2 == 0, "stem fusion assumes even conv1 output"
    wc = wo // 2
    hp = ho // 2

    rpt = _pick_rows_per_tile(ho, wc, max_tile_pairs)
    tile_pairs = rpt * wc                                          # M tile (in pairs)

    # conv1 weights (Cout,Cin,kh,kw) -> (kh,kw,Cin,Cout) -> (147,64) -> block-diag (294,128)
    wm = jnp.transpose(params["conv1_w"], (2, 3, 1, 0)).reshape(KK, C_REAL)
    wm = wm.astype(jnp.bfloat16)
    wb = jnp.zeros((K2, C_PACK), jnp.bfloat16)
    wb = wb.at[:KK, :C_REAL].set(wm).at[KK:, C_REAL:].set(wm)

    # ---- conv1 + per-tile BN partial statistics (parallel grid) ---- #
    y_flat, stats = _conv_stats_call(patches, wb, tile_pairs)      # [M/2,128] bf16, [T,2,128] f32

    # ---- BN batch statistics: Chan parallel-variance combine (biased var) ---- #
    sums, m2s = stats[:, 0, :], stats[:, 1, :]                     # (T, 128)
    sums_g = jnp.concatenate([sums[:, :C_REAL], sums[:, C_REAL:]], axis=0)   # (2T, 64)
    m2s_g = jnp.concatenate([m2s[:, :C_REAL], m2s[:, C_REAL:]], axis=0)
    cnt = float(tile_pairs)                                        # elements per group
    m_total = float(n * ho * wo)                                   # == 2T * cnt
    mean = jnp.sum(sums_g, axis=0) / m_total                       # (64,)
    mean_g = sums_g / cnt
    var = (jnp.sum(m2s_g, axis=0)
           + cnt * jnp.sum(jnp.square(mean_g - mean), axis=0)) / m_total
    var = jnp.maximum(var, 0.0)
    scale64 = params["bn1_gamma"] * lax.rsqrt(var + EPS)
    shift64 = params["bn1_beta"] - mean * scale64
    scale = jnp.concatenate([scale64, scale64]).reshape(1, C_PACK).astype(jnp.float32)
    shift = jnp.concatenate([shift64, shift64]).reshape(1, C_PACK).astype(jnp.float32)

    # ---- fused BN apply + ReLU + 3x3/s2/p1 maxpool (one image per step) ---- #
    y5 = y_flat.reshape(n, hp, 2, wc, C_PACK)       # free leading-dim split (no relayout)
    pooled = _bn_relu_pool_call(y5, scale, shift)   # (N, Hp, Wp, 64) f32

    # TODO(synk): drop / fuse this transpose if the consumer can take NHWC.
    return jnp.transpose(pooled, (0, 3, 1, 2))      # NHWC -> NCHW


# --------------------------- pure-JAX reference ----------------------------- #

def _reference_forward(x_nchw, params):
    x = x_nchw.astype(jnp.float32)
    y = lax.conv_general_dilated(
        x, params["conv1_w"], window_strides=(2, 2),
        padding=((3, 3), (3, 3)),
        dimension_numbers=("NCHW", "OIHW", "NCHW"),
        precision=lax.Precision.HIGHEST)
    mean = jnp.mean(y, axis=(0, 2, 3), keepdims=True)
    var = jnp.mean(jnp.square(y - mean), axis=(0, 2, 3), keepdims=True)
    y = (y - mean) * lax.rsqrt(var + EPS)
    y = y * params["bn1_gamma"].reshape(1, -1, 1, 1) \
          + params["bn1_beta"].reshape(1, -1, 1, 1)
    y = jnp.maximum(y, 0.0)
    return lax.reduce_window(y, -jnp.inf, lax.max,
                             (1, 1, 3, 3), (1, 1, 2, 2),
                             ((0, 0), (0, 0), (1, 1), (1, 1)))


if __name__ == "__main__":
    key = jax.random.PRNGKey(0)
    kx, kp = jax.random.split(key)

    x = jax.random.normal(kx, (2, 3, 16, 16), jnp.float32)   # NCHW input
    params = init_params(kp)

    # max_tile_pairs=16 -> 2 M-tiles per image (4 conv grid steps) on this toy
    # shape, exercising the multi-tile stats combine; real shapes use the
    # 2048-pair (~4096 output pixel) default.
    out = resnet_backbone_forward(x, params, max_tile_pairs=16)
    out = jax.block_until_ready(out)

    assert out.shape == (2, 64, 4, 4), out.shape
    assert out.dtype == jnp.float32
    assert bool(jnp.all(jnp.isfinite(out))) and bool(jnp.all(out >= 0.0))

    ref = jax.block_until_ready(_reference_forward(x, params))
    max_err = float(jnp.max(jnp.abs(out - ref)))
    assert jnp.allclose(out, ref, atol=2e-2, rtol=2e-2), max_err

    print("KERNEL_OK")
</pallas_src>

<mosaic_0001>
module attributes {stable_mosaic.version = 11 : i64} {
  func.func @_conv_stats_kernel(%arg0: i32, %arg1: memref<16x294xbf16, #tpu.memory_space<vmem>>, %arg2: memref<294x128xbf16, #tpu.memory_space<vmem>>, %arg3: memref<16x128xbf16, #tpu.memory_space<vmem>>, %arg4: memref<1x2x128xf32, #tpu.memory_space<vmem>>) attributes {dimension_semantics = [#tpu.dimension_semantics<parallel>], iteration_bounds = array<i64: 4>, scalar_prefetch = 0 : i64, scratch_operands = 0 : i64, tpu.core_type = #tpu.core_type<tc>, window_params = [{transform_indices = @transform_0, window_bounds = array<i64: 16, 294>}, {pipeline_mode = #tpu.pipeline_mode<synchronous>, transform_indices = @transform_1, window_bounds = array<i64: 294, 128>}, {transform_indices = @transform_2, window_bounds = array<i64: 16, 128>}, {transform_indices = @transform_3, window_bounds = array<i64: 1, 2, 128>}]} {
    %c0 = arith.constant 0 : index
    %c0_0 = arith.constant 0 : index
    %0 = vector.load %arg1[%c0, %c0_0] : memref<16x294xbf16, #tpu.memory_space<vmem>>, vector<16x294xbf16>
    %c0_1 = arith.constant 0 : index
    %c0_2 = arith.constant 0 : index
    %1 = vector.load %arg2[%c0_1, %c0_2] : memref<294x128xbf16, #tpu.memory_space<vmem>>, vector<294x128xbf16>
    %cst = arith.constant dense<0.000000e+00> : vector<16x128xf32>
    %2 = tpu.matmul %0, %1, %cst {dimension_numbers = #tpu.dot_dimension_numbers<[1], [0], [0], [1], [0, 0, 1, 1], [], []>} : vector<16x294xbf16>, vector<294x128xbf16>, vector<16x128xf32> -> vector<16x128xf32>
    %3 = arith.truncf %2 : vector<16x128xf32> to vector<16x128xbf16>
    %c0_3 = arith.constant 0 : index
    %c0_4 = arith.constant 0 : index
    %4 = vector.load %arg3[%c0_3, %c0_4] : memref<16x128xbf16, #tpu.memory_space<vmem>>, vector<16x128xbf16>
    tpu.vector_store %arg3[%c0_3, %c0_4], %3 {strides = array<i32>} : memref<16x128xbf16, #tpu.memory_space<vmem>>, vector<16x128xbf16>,
    %cst_5 = arith.constant dense<0.000000e+00> : vector<128xf32>
    %5 = vector.multi_reduction <add>, %2, %cst_5 [0] : vector<16x128xf32> to vector<128xf32>
    %6 = vector.shape_cast %5 : vector<128xf32> to vector<1x128xf32>
    %cst_6 = arith.constant 6.250000e-02 : f32
    %7 = vector.broadcast %cst_6 : f32 to vector<1x128xf32>
    %8 = arith.mulf %6, %7 : vector<1x128xf32>
    %9 = vector.broadcast %8 : vector<1x128xf32> to vector<16x128xf32>
    %10 = arith.subf %2, %9 : vector<16x128xf32>
    %11 = arith.mulf %10, %10 : vector<16x128xf32>
    %cst_7 = arith.constant dense<0.000000e+00> : vector<128xf32>
    %12 = vector.multi_reduction <add>, %11, %cst_7 [0] : vector<16x128xf32> to vector<128xf32>
    %13 = vector.shape_cast %12 : vector<128xf32> to vector<1x128xf32>
    %14 = tpu.concatenate %6, %13 in 0 : vector<1x128xf32>, vector<1x128xf32> -> vector<2x128xf32>
    %15 = vector.shape_cast %14 : vector<2x128xf32> to vector<1x2x128xf32>
    %c0_8 = arith.constant 0 : index
    %c0_9 = arith.constant 0 : index
    %c0_10 = arith.constant 0 : index
    %16 = vector.load %arg4[%c0_8, %c0_9, %c0_10] : memref<1x2x128xf32, #tpu.memory_space<vmem>>, vector<1x2x128xf32>
    tpu.vector_store %arg4[%c0_8, %c0_9, %c0_10], %15 {strides = array<i32>} : memref<1x2x128xf32, #tpu.memory_space<vmem>>, vector<1x2x128xf32>,
    return
  }
  func.func @transform_0(%arg0: i32) -> (i32, i32) {
    %c0_i32 = arith.constant 0 : i32
    %c0_i32_0 = arith.constant 0 : i32
    return %arg0, %c0_i32 : i32, i32
  }
  func.func @transform_1(%arg0: i32) -> (i32, i32) {
    %c0_i32 = arith.constant 0 : i32
    %c0_i32_0 = arith.constant 0 : i32
    %c0_i32_1 = arith.constant 0 : i32
    return %c0_i32, %c0_i32_0 : i32, i32
  }
  func.func @transform_2(%arg0: i32) -> (i32, i32) {
    %c0_i32 = arith.constant 0 : i32
    %c0_i32_0 = arith.constant 0 : i32
    return %arg0, %c0_i32 : i32, i32
  }
  func.func @transform_3(%arg0: i32) -> (i32, i32, i32) {
    %c0_i32 = arith.constant 0 : i32
    %c0_i32_0 = arith.constant 0 : i32
    %c0_i32_1 = arith.constant 0 : i32
    return %arg0, %c0_i32, %c0_i32_0 : i32, i32, i32
  }
}

</mosaic_0001>

<llo_original>
// kernel: tpu_custom_call.1
$region0: #{tpu_custom_call.1}
  #allocation0 [shape = 'u32[]', space=smem, size = 0x4, offset = 0x4, fixed_abs, tag = 'smem constant byte address 0x4 - core index']
  #allocation1 [shape = 'u32[144,128]{1,0:T(1,128)}', space=vmem, size = 0x12000, scoped, tag = 'internal scratch']
  %s0 = inlined_call_operand.hbm [shape: bf16[64,294], index: 0, kind: input, shape index: {}]
  %s1 = inlined_call_operand.hbm [shape: bf16[294,128], index: 1, kind: input, shape index: {}]
  %s2 = inlined_call_operand.hbm [shape: bf16[64,128], index: 2, kind: output, shape index: {0}]
  %s3 = inlined_call_operand.hbm [shape: f32[4,2,128], index: 3, kind: output, shape index: {1}]
  %4 = xla_tuple %s2, %s3
  %s5 = sld [smem:[#allocation0]]
  $region57: #{tpu_custom_call.1} parent=0
    _
  %s7 = ssub.s32 1, %s5
  %s8 = scalar_select 0, %s7, %s5
  $region1: #{tpu_custom_call.1} parent=0
    #allocation2 [shape = 'u8[24576]{0}', space=vmem, size = 0x6000, scoped, tag = 'input window, operand 0']
    #allocation3 [shape = 's32[2]{0}', space=sflag, size = 0x8, scoped, tag = 'scoped memory for tpu_custom_call.1']
    #allocation4 [shape = 's32[2]{0}', space=sflag, size = 0x8, scoped, tag = 'scoped memory for tpu_custom_call.1']
    #allocation5 [shape = 'u8[75776]{0}', space=vmem, size = 0x12800, scoped, tag = 'input window, operand 1, single buffered']
    #allocation6 [shape = 's32[1]{0}', space=sflag, size = 0x4, scoped, tag = 'scoped memory for tpu_custom_call.1']
    #allocation7 [shape = 'u8[8192]{0}', space=vmem, size = 0x2000, scoped, tag = 'output window, operand 0']
    #allocation8 [shape = 'u8[2048]{0}', space=vmem, size = 0x800, scoped, tag = 'output window, operand 1']
    #allocation9 [shape = 's32[2]{0}', space=sflag, size = 0x8, scoped, tag = 'scoped memory for tpu_custom_call.1']
    %9 = vsyncpa [#allocation3], 0
    %s10 = scalar_lea.sflag [#allocation3], 1
    %11 = vsyncpa %s10, 0
    %12 = vsyncpa [#allocation6], 0
    %13 = vsyncpa [#allocation4], 0
    %s14 = scalar_lea.sflag [#allocation4], 1
    %15 = vsyncpa %s14, 0
    %16 = vsyncpa [#allocation9], 0
    %s17 = scalar_lea.sflag [#allocation9], 1
    %18 = vsyncpa %s17, 0
    loop: start=0, step=1, limit=6
    $region2: #{tpu_custom_call.1} parent=1 // loop_pre_header
      _
    $region3: #{tpu_custom_call.1} parent=1 // loop_header
      %s20 = sphi 0, %s24
      %p21 = scmp.ge.s32.totalorder %s20, 6
      %s30 = sphi 0, %s32
      %s33 = sphi 0, %s30
      %s34 = sphi 0, %s33
      %s50 = sphi 0, %s34
      %s54 = sphi 0, %s54
      %s56 = sphi 0, %s54
      %s57 = sphi 0, %s56
      %s71 = sphi 0, %s57
      %s77 = sphi 0, %s79
      %s80 = sphi 0, %s77
      %s81 = sphi 0, %s80
      %s97 = sphi 0, %s81
      %s103 = sphi 0, %s105
      %s106 = sphi 0, %s103
      %s107 = sphi 0, %s106
      %s123 = sphi 0, %s107
    $region4: #{tpu_custom_call.1} parent=1 // loop_header_branch
      %23 = sbr.rel (%p21) target = $region8
    $region5: #{tpu_custom_call.1} parent=1 // loop_body
      %s25 = ssub.s32 %s20, 1
      %s26 = ssub.s32 %s20, 2
      %s27 = sadd.s32 %s20, 1
      %s28 = ssub.s32 %s20, %s27
      %p29 = scmp.eq.s32.totalorder %s28, 0
      %s31 = sadd.s32 %s30, 1
      %s32 = scalar_select %p29, %s30, %s31
      %p35 = pneg %p29
      %p36 = scmp.eq.s32.totalorder %s20, 3
      %p37 = por %p35, %p36
      %p38 = scmp.ne.s32.totalorder %s30, %s33
      %p39 = scmp.eq.s32.totalorder %s20, 0
      %p40 = por %p38, %p39
      %p41 = scmp.ne.s32.totalorder %s30, %s33
      %p42 = scmp.eq.s32.totalorder %s25, 3
      %p43 = por %p41, %p42
      %p44 = scmp.ne.s32.totalorder %s33, %s34
      %p45 = scmp.eq.s32.totalorder %s25, 0
      %p46 = por %p44, %p45
      %p47 = scmp.ne.s32.totalorder %s33, %s34
      %p48 = scmp.eq.s32.totalorder %s26, 3
      %p49 = por %p47, %p48
      %p51 = scmp.ne.s32.totalorder %s34, %s50
      %p52 = scmp.eq.s32.totalorder %s26, 0
      %p53 = por %p51, %p52
      %s55 = sadd.s32 %s54, 1
      %p58 = scmp.eq.s32.totalorder %s20, 3
      %p59 = scmp.ne.s32.totalorder %s54, %s56
      %p60 = scmp.eq.s32.totalorder %s20, 0
      %p61 = por %p59, %p60
      %p62 = scmp.ne.s32.totalorder %s54, %s56
      %p63 = scmp.eq.s32.totalorder %s25, 3
      %p64 = por %p62, %p63
      %p65 = scmp.ne.s32.totalorder %s56, %s57
      %p66 = scmp.eq.s32.totalorder %s25, 0
      %p67 = por %p65, %p66
      %p68 = scmp.ne.s32.totalorder %s56, %s57
      %p69 = scmp.eq.s32.totalorder %s26, 3
      %p70 = por %p68, %p69
      %p72 = scmp.ne.s32.totalorder %s57, %s71
      %p73 = scmp.eq.s32.totalorder %s26, 0
      %p74 = por %p72, %p73
      %s75 = ssub.s32 %s20, %s27
      %p76 = scmp.eq.s32.totalorder %s75, 0
      %s78 = sadd.s32 %s77, 1
      %s79 = scalar_select %p76, %s77, %s78
      %p82 = pneg %p76
      %p83 = scmp.eq.s32.totalorder %s20, 3
      %p84 = por %p82, %p83
      %p85 = scmp.ne.s32.totalorder %s77, %s80
      %p86 = scmp.eq.s32.totalorder %s20, 0
      %p87 = por %p85, %p86
      %p88 = scmp.ne.s32.totalorder %s77, %s80
      %p89 = scmp.eq.s32.totalorder %s25, 3
      %p90 = por %p88, %p89
      %p91 = scmp.ne.s32.totalorder %s80, %s81
      %p92 = scmp.eq.s32.totalorder %s25, 0
      %p93 = por %p91, %p92
      %p94 = scmp.ne.s32.totalorder %s80, %s81
      %p95 = scmp.eq.s32.totalorder %s26, 3
      %p96 = por %p94, %p95
      %p98 = scmp.ne.s32.totalorder %s81, %s97
      %p99 = scmp.eq.s32.totalorder %s26, 0
      %p100 = por %p98, %p99
      %s101 = ssub.s32 %s20, %s27
      %p102 = scmp.eq.s32.totalorder %s101, 0
      %s104 = sadd.s32 %s103, 1
      %s105 = scalar_select %p102, %s103, %s104
      %p108 = pneg %p102
      %p109 = scmp.eq.s32.totalorder %s20, 3
      %p110 = por %p108, %p109
      %p111 = scmp.ne.s32.totalorder %s103, %s106
      %p112 = scmp.eq.s32.totalorder %s20, 0
      %p113 = por %p111, %p112
      %p114 = scmp.ne.s32.totalorder %s103, %s106
      %p115 = scmp.eq.s32.totalorder %s25, 3
      %p116 = por %p114, %p115
      %p117 = scmp.ne.s32.totalorder %s106, %s107
      %p118 = scmp.eq.s32.totalorder %s25, 0
      %p119 = por %p117, %p118
      %p120 = scmp.ne.s32.totalorder %s106, %s107
      %p121 = scmp.eq.s32.totalorder %s26, 3
      %p122 = por %p120, %p121
      %p124 = scmp.ne.s32.totalorder %s107, %s123
      %p125 = scmp.eq.s32.totalorder %s26, 0
      %p126 = por %p124, %p125
      %p127 = scmp.le.s32.totalorder 1, %s20
      %p128 = scmp.lt.s32.totalorder %s20, 5
      %p129 = pnand %p127, %p128
      %p130 = pneg %p129
      // Predicated region
      $region9: #{tpu_custom_call.1} parent=5 // pred_check
        _
      $region10: #{tpu_custom_call.1} parent=5 // pred_check_branch
        %132 = sbr.rel (%p129) target = $region12
      $region11: #{tpu_custom_call.1} parent=5 // pred_region
        %s133 = ssub.s32 %s20, 1
        // Predicated region
        $region13: #{tpu_custom_call.1} parent=11 // pred_check
          %p134 = pneg %p67
        $region14: #{tpu_custom_call.1} parent=11 // pred_check_branch
          %136 = sbr.rel (%p134) target = $region16
        $region15: #{tpu_custom_call.1} parent=11 // pred_region
          %s138 = ssub.s32 2368, 2368
          %139 = vsyncadd [#allocation6], %s138
          %s140 = sshll.u32 [#allocation5], 4
          %s141 = int_to_ptr.vmem [resolvable:$true] %s140
          %146 = dma.hbm_to_vmem [thread:$0]  %s1, 2368, %s141, [#allocation6], 64, 64, 4
        $region16: #{tpu_custom_call.1} parent=11 // pred_fallthru
          _
      $region12: #{tpu_custom_call.1} parent=5 // pred_fallthru
        _
      %p147 = scmp.lt.s32.totalorder %s20, 4
      // Predicated region
      $region17: #{tpu_custom_call.1} parent=5 // pred_check
        %p148 = pneg %p147
      $region18: #{tpu_custom_call.1} parent=5 // pred_check_branch
        %150 = sbr.rel (%p148) target = $region20
      $region19: #{tpu_custom_call.1} parent=5 // pred_region
        // Predicated region
        $region21: #{tpu_custom_call.1} parent=19 // pred_check
          %p151 = pneg %p40
        $region22: #{tpu_custom_call.1} parent=19 // pred_check_branch
          %153 = sbr.rel (%p151) target = $region24
        $region23: #{tpu_custom_call.1} parent=19 // pred_region
          %s154 = sand.u32 %s30, 1
          %s155 = scalar_lea.sflag [#allocation3], %s154
          %s156 = sand.u32 %s30, 1
          %s157 = smul.addr %s156, 24
          %s158 = scalar_lea.vmem [#allocation2], %s157
          %s159 = smul.u32 2, %s20
          %s161 = ssub.s32 384, 384
          %162 = vsyncadd %s155, %s161
          %s163 = smul.addr %s159, 3
          %s164 = smul.addr %s163, 64
          %s165 = scalar_lea.hbm %s0, %s164
          %s166 = sshll.u32 %s158, 4
          %s167 = int_to_ptr.vmem [resolvable:$true] %s166
          %172 = dma.hbm_to_vmem [thread:$0]  %s165, 384, %s167, %s155, 192, 192, 12
        $region24: #{tpu_custom_call.1} parent=19 // pred_fallthru
          _
      $region20: #{tpu_custom_call.1} parent=5 // pred_fallthru
        _
      %p173 = scmp.le.s32.totalorder 1, %s20
      %p174 = scmp.lt.s32.totalorder %s20, 5
      %p175 = pnand %p173, %p174
      %p176 = pneg %p175
      // Predicated region
      $region25: #{tpu_custom_call.1} parent=5 // pred_check
        _
      $region26: #{tpu_custom_call.1} parent=5 // pred_check_branch
        %178 = sbr.rel (%p175) target = $region28
      $region27: #{tpu_custom_call.1} parent=5 // pred_region
        %s179 = ssub.s32 %s20, 1
        %s180 = sand.u32 %s33, 1
        %s181 = scalar_lea.sflag [#allocation3], %s180
        %s182 = sand.u32 %s33, 1
        %s183 = smul.addr %s182, 24
        %s184 = scalar_lea.vmem [#allocation2], %s183
        // Predicated region
        $region29: #{tpu_custom_call.1} parent=27 // pred_check
          %p185 = pneg %p46
        $region30: #{tpu_custom_call.1} parent=27 // pred_check_branch
          %187 = sbr.rel (%p185) target = $region32
        $region31: #{tpu_custom_call.1} parent=27 // pred_region
          %188 = dma.done %s181, 384
        $region32: #{tpu_custom_call.1} parent=27 // pred_fallthru
          _
        // Predicated region
        $region33: #{tpu_custom_call.1} parent=27 // pred_check
          %p189 = pneg %p67
        $region34: #{tpu_custom_call.1} parent=27 // pred_check_branch
          %191 = sbr.rel (%p189) target = $region36
        $region35: #{tpu_custom_call.1} parent=27 // pred_region
          %192 = dma.done [#allocation6], 2368
        $region36: #{tpu_custom_call.1} parent=27 // pred_fallthru
          _
        %s193 = sand.u32 %s33, 1
        %s194 = scalar_lea.sflag [#allocation3], %s193
        %s195 = sand.u32 %s33, 1
        %s196 = smul.addr %s195, 24
        %s197 = scalar_lea.vmem [#allocation2], %s196
        %p198 = pneg %p46
        %p199 = pneg %p43
        %p200 = pneg %p67
        %p201 = pneg %p64
        %p202 = pneg %p93
        %p203 = pneg %p90
        %s204 = sand.u32 %s80, 1
        %s205 = scalar_lea.sflag [#allocation4], %s204
        %s206 = sand.u32 %s80, 1
        %s207 = smul.addr %s206, 8
        %s208 = scalar_lea.vmem [#allocation7], %s207
        %p209 = pneg %p119
        %p210 = pneg %p116
        %s211 = sand.u32 %s106, 1
        %s212 = scalar_lea.sflag [#allocation9], %s211
        %s213 = sand.u32 %s106, 1
        %s214 = smul.addr %s213, 2
        %s215 = scalar_lea.vmem [#allocation8], %s214
        %s216 = smul.u32 2, %s25
        %s217 = smul.u32 2, %s25
        %v219 = vld [vmem:[%s184] sm:$0xff]
        %v220 = vld [vmem:[%s184 + $0x8] sm:$0xf]
        %v221 = vld [vmem:[%s184 + $0xc] sm:$0xff]
        %v222 = vld [vmem:[%s184 + $0x14] sm:$0xf]
        %v223 = vld [vmem:[#allocation5] sm:$0xf]
        %v224 = vld [vmem:[#allocation5 + $0x4] sm:$0xf]
        %v225 = vld [vmem:[#allocation5 + $0x8] sm:$0xf]
        %v226 = vld [vmem:[#allocation5 + $0xc] sm:$0xf]
        %v227 = vld [vmem:[#allocation5 + $0x10] sm:$0xf]
        %v228 = vld [vmem:[#allocation5 + $0x14] sm:$0xf]
        %v229 = vld [vmem:[#allocation5 + $0x18] sm:$0xf]
        %v230 = vld [vmem:[#allocation5 + $0x1c] sm:$0xf]
        %v231 = vld [vmem:[#allocation5 + $0x20] sm:$0xf]
        %v232 = vld [vmem:[#allocation5 + $0x24] sm:$0xf]
        %v233 = vld [vmem:[#allocation5 + $0x28] sm:$0xf]
        %v234 = vld [vmem:[#allocation5 + $0x2c] sm:$0xf]
        %v235 = vld [vmem:[#allocation5 + $0x30] sm:$0xf]
        %v236 = vld [vmem:[#allocation5 + $0x34] sm:$0xf]
        %v237 = vld [vmem:[#allocation5 + $0x38] sm:$0xf]
        %v238 = vld [vmem:[#allocation5 + $0x3c] sm:$0xf]
        %v239 = vld [vmem:[#allocation5 + $0x40] sm:$0xf]
        %v240 = vld [vmem:[#allocation5 + $0x44] sm:$0xf]
        %v241 = vld [vmem:[#allocation5 + $0x48] sm:$0xf]
        %v242 = vld [vmem:[#allocation5 + $0x4c] sm:$0xf]
        %v243 = vld [vmem:[#allocation5 + $0x50] sm:$0xf]
        %v244 = vld [vmem:[#allocation5 + $0x54] sm:$0xf]
        %v245 = vld [vmem:[#allocation5 + $0x58] sm:$0xf]
        %v246 = vld [vmem:[#allocation5 + $0x5c] sm:$0xf]
        %v247 = vld [vmem:[#allocation5 + $0x60] sm:$0xf]
        %v248 = vld [vmem:[#allocation5 + $0x64] sm:$0xf]
        %v249 = vld [vmem:[#allocation5 + $0x68] sm:$0xf]
        %v250 = vld [vmem:[#allocation5 + $0x6c] sm:$0xf]
        %v251 = vld [vmem:[#allocation5 + $0x70] sm:$0xf]
        %v252 = vld [vmem:[#allocation5 + $0x74] sm:$0xf]
        %v253 = vld [vmem:[#allocation5 + $0x78] sm:$0xf]
        %v254 = vld [vmem:[#allocation5 + $0x7c] sm:$0xf]
        %v255 = vld [vmem:[#allocation5 + $0x80] sm:$0xf]
        %v256 = vld [vmem:[#allocation5 + $0x84] sm:$0xf]
        %v257 = vld [vmem:[#allocation5 + $0x88] sm:$0xf]
        %v258 = vld [vmem:[#allocation5 + $0x8c] sm:$0xf]
        %v259 = vld [vmem:[#allocation5 + $0x90] sm:$0x7]
        %v264 = vunpack.c.l.b16 %v219
        %v265 = vunpack.c.h.b16 %v219
        %v266 = vunpack.c.l.b16 %v220
        %v267 = vunpack.c.l.b16 %v221
        %v268 = vunpack.c.h.b16 %v221
        %v269 = vunpack.c.l.b16 %v222
        %v270 = vpack.c.b16 %v267, %v264
        %v271 = vpack.c.b16 %v268, %v265
        %v272 = vpack.c.b16 %v269, %v266
        %v312 = vunpack.c.l.b16 %v223
        %v313 = vunpack.c.l.b16 %v224
        %v314 = vunpack.c.l.b16 %v225
        %v315 = vunpack.c.l.b16 %v226
        %v316 = vunpack.c.l.b16 %v227
        %v317 = vunpack.c.l.b16 %v228
        %v318 = vunpack.c.l.b16 %v229
        %v319 = vunpack.c.l.b16 %v230
        %v320 = vunpack.c.l.b16 %v231
        %v321 = vunpack.c.l.b16 %v232
        %v322 = vunpack.c.l.b16 %v233
        %v323 = vunpack.c.l.b16 %v234
        %v324 = vunpack.c.l.b16 %v235
        %v325 = vunpack.c.l.b16 %v236
        %v326 = vunpack.c.l.b16 %v237
        %v327 = vunpack.c.l.b16 %v238
        %v328 = vunpack.c.l.b16 %v239
        %v329 = vunpack.c.l.b16 %v240
        %v330 = vunpack.c.l.b16 %v241
        %v331 = vunpack.c.l.b16 %v242
        %v332 = vunpack.c.l.b16 %v243
        %v333 = vunpack.c.l.b16 %v244
        %v334 = vunpack.c.l.b16 %v245
        %v335 = vunpack.c.l.b16 %v246
        %v336 = vunpack.c.l.b16 %v247
        %v337 = vunpack.c.l.b16 %v248
        %v338 = vunpack.c.l.b16 %v249
        %v339 = vunpack.c.l.b16 %v250
        %v340 = vunpack.c.l.b16 %v251
        %v341 = vunpack.c.l.b16 %v252
        %v342 = vunpack.c.l.b16 %v253
        %v343 = vunpack.c.l.b16 %v254
        %v344 = vunpack.c.l.b16 %v255
        %v345 = vunpack.c.l.b16 %v256
        %v346 = vunpack.c.l.b16 %v257
        %v347 = vunpack.c.l.b16 %v258
        %v348 = vunpack.c.l.b16 %v259
        %v349 = vpack.c.b16 %v313, %v312
        %v350 = vpack.c.b16 %v315, %v314
        %v351 = vpack.c.b16 %v317, %v316
        %v352 = vpack.c.b16 %v319, %v318
        %v353 = vpack.c.b16 %v321, %v320
        %v354 = vpack.c.b16 %v323, %v322
        %v355 = vpack.c.b16 %v325, %v324
        %v356 = vpack.c.b16 %v327, %v326
        %v357 = vpack.c.b16 %v329, %v328
        %v358 = vpack.c.b16 %v331, %v330
        %v359 = vpack.c.b16 %v333, %v332
        %v360 = vpack.c.b16 %v335, %v334
        %v361 = vpack.c.b16 %v337, %v336
        %v362 = vpack.c.b16 %v339, %v338
        %v363 = vpack.c.b16 %v341, %v340
        %v364 = vpack.c.b16 %v343, %v342
        %v365 = vpack.c.b16 %v345, %v344
        %v366 = vpack.c.b16 %v347, %v346
        %v367 = vpack.c.b16 %v348, %v348
        %vm386 = vcmask 310272
        %v388 = vsel %vm386, %v272, 0
        %vm390 = vcmask 1042432
        %v392 = vsel %vm390, %v367, 0
        %394 = vmatprep.subr.bf16.mxu0 0
        %395 = vmatpush1.bf16.msra.mxu0 %v349
        %396 = vmatprep.subr.bf16.mxu0 0
        %397 = vmatpush1.bf16.msra.mxu0 %v350
        %398 = vmatprep.subr.bf16.mxu0 0
        %399 = vmatpush1.bf16.msra.mxu0 %v351
        %400 = vmatprep.subr.bf16.mxu0 0
        %401 = vmatpush1.bf16.msra.mxu0 %v352
        %402 = vmatprep.subr.bf16.mxu0 0
        %403 = vmatpush1.bf16.msra.mxu0 %v353
        %404 = vmatprep.subr.bf16.mxu0 0
        %405 = vmatpush1.bf16.msra.mxu0 %v354
        %406 = vmatprep.subr.bf16.mxu0 0
        %407 = vmatpush1.bf16.msra.mxu0 %v355
        %408 = vmatprep.subr.bf16.mxu0 0
        %409 = vmatpush1.bf16.msra.mxu0 %v356
        %410 = vmatprep.subr.bf16.mxu0 0
        %411 = vmatpush1.bf16.msra.mxu0 %v357
        %412 = vmatprep.subr.bf16.mxu0 0
        %413 = vmatpush1.bf16.msra.mxu0 %v358
        %414 = vmatprep.subr.bf16.mxu0 0
        %415 = vmatpush1.bf16.msra.mxu0 %v359
        %416 = vmatprep.subr.bf16.mxu0 0
        %417 = vmatpush1.bf16.msra.mxu0 %v360
        %418 = vmatprep.subr.bf16.mxu0 0
        %419 = vmatpush1.bf16.msra.mxu0 %v361
        %420 = vmatprep.subr.bf16.mxu0 0
        %421 = vmatpush1.bf16.msra.mxu0 %v362
        %422 = vmatprep.subr.bf16.mxu0 0
        %423 = vmatpush1.bf16.msra.mxu0 %v363
        %424 = vmatprep.subr.bf16.mxu0 0
        %425 = vmatpush1.bf16.msra.mxu0 %v364
        %426 = vmatprep.mubr.bf16.mxu0 %v271
        %427 = vmatmul.mubr.bf16.gmra.mrb[0].mxu0 %v270
        %v428 = vpop.f32.mrb[0].mxu0
        %v429 = vadd.f32 0.0, %v428
        %v430 = vpop.f32.mrb[0].mxu0
        %v431 = vpop.f32.mrb[0].mxu0
        %v432 = vadd.f32 0.0, %v431
        %v433 = vpop.f32.mrb[0].mxu0
        %434 = vdwg.mxu0
        %435 = vmatprep.subr.bf16.mxu0 0
        %436 = vmatpush1.bf16.msra.mxu0 %v365
        %437 = vmatprep.subr.bf16.mxu0 0
        %438 = vmatpush1.bf16.msra.mxu0 %v366
        %439 = vmatprep.subr.bf16.mxu0 0
        %440 = vmatpush1.bf16.msra.mxu0 %v392
        %441 = vmatprep.subr.bf16.mxu0 0
        %442 = vmatpush1.bf16.msra.mxu0 0
        %443 = vmatprep.subr.bf16.mxu0 0
        %444 = vmatpush1.bf16.msra.mxu0 0
        %445 = vmatprep.subr.bf16.mxu0 0
        %446 = vmatpush1.bf16.msra.mxu0 0
        %447 = vmatprep.subr.bf16.mxu0 0
        %448 = vmatpush1.bf16.msra.mxu0 0
        %449 = vmatprep.subr.bf16.mxu0 0
        %450 = vmatpush1.bf16.msra.mxu0 0
        %451 = vmatprep.subr.bf16.mxu0 0
        %452 = vmatpush1.bf16.msra.mxu0 0
        %453 = vmatprep.subr.bf16.mxu0 0
        %454 = vmatpush1.bf16.msra.mxu0 0
        %455 = vmatprep.subr.bf16.mxu0 0
        %456 = vmatpush1.bf16.msra.mxu0 0
        %457 = vmatprep.subr.bf16.mxu0 0
        %458 = vmatpush1.bf16.msra.mxu0 0
        %459 = vmatprep.subr.bf16.mxu0 0
        %460 = vmatpush1.bf16.msra.mxu0 0
        %461 = vmatprep.subr.bf16.mxu0 0
        %462 = vmatpush1.bf16.msra.mxu0 0
        %463 = vmatprep.subr.bf16.mxu0 0
        %464 = vmatpush1.bf16.msra.mxu0 0
        %465 = vmatprep.subr.bf16.mxu0 0
        %466 = vmatpush1.bf16.msra.mxu0 0
        %467 = vmatprep.mubr.bf16.mxu0 0
        %468 = vmatmul.mubr.bf16.gmra.mrb[0].mxu0 %v388
        %v469 = vpop.f32.mrb[0].mxu0
        %v470 = vadd.f32 %v429, %v469
        %v471 = vpop.f32.mrb[0].mxu0
        %v472 = vpop.f32.mrb[0].mxu0
        %v473 = vadd.f32 %v432, %v472
        %v474 = vpop.f32.mrb[0].mxu0
        %475 = vdwg.mxu0
        %v476 = vpack.c.bf16 %v473, %v470
        %v478 = vunpack.c.l.b16 %v476
        %v479 = vunpack.c.h.b16 %v476
        %v480 = vpack.c.b16 %v478, %v478
        %v481 = vpack.c.b16 %v479, %v479
        %484 = vst [vmem:[%s208] sm:$0xf] %v480
        %485 = vst [vmem:[%s208 + $0x4] sm:$0xf] %v481
        %v486 = vadd.f32 %v470, %v473
        %v487 = vrot.slane %v486, 4
        %v488 = vadd.f32 %v486, %v487
        %v489 = vrot.slane %v488, 2
        %v490 = vadd.f32 %v488, %v489
        %v491 = vrot.slane %v490, 1
        %v492 = vadd.f32 %v490, %v491
        %v493 = vmul.f32 %v492, 0.0625
        %v494 = vsub.f32 %v470, %v493
        %v495 = vsub.f32 %v473, %v493
        %v496 = vmul.f32 %v494, %v494
        %v497 = vmul.f32 %v495, %v495
        %v498 = vadd.f32 %v496, %v497
        %v499 = vrot.slane %v498, 4
        %v500 = vadd.f32 %v498, %v499
        %v501 = vrot.slane %v500, 2
        %v502 = vadd.f32 %v500, %v501
        %v503 = vrot.slane %v502, 1
        %v504 = vadd.f32 %v502, %v503
        %vm505 = vcmask 1040384
        %v506 = vsel %vm505, %v492, %v504
        %507 = vst [vmem:[%s215] sm:$0x3] %v506
        %s508 = sand.u32 %s80, 1
        %s509 = scalar_lea.sflag [#allocation4], %s508
        %s510 = sand.u32 %s80, 1
        %s511 = smul.addr %s510, 8
        %s512 = scalar_lea.vmem [#allocation7], %s511
        %s513 = sand.u32 %s106, 1
        %s514 = scalar_lea.sflag [#allocation9], %s513
        %s515 = sand.u32 %s106, 1
        %s516 = smul.addr %s515, 2
        %s517 = scalar_lea.vmem [#allocation8], %s516
        // Predicated region
        $region37: #{tpu_custom_call.1} parent=27 // pred_check
          %p518 = pneg %p90
        $region38: #{tpu_custom_call.1} parent=27 // pred_check_branch
          %520 = sbr.rel (%p518) target = $region40
        $region39: #{tpu_custom_call.1} parent=27 // pred_region
          %s521 = smul.u32 2, %s25
          %s523 = ssub.s32 128, 128
          %524 = vsyncadd %s509, %s523
          %s525 = smul.addr %s521, 64
          %s526 = scalar_lea.hbm %s2, %s525
          %s527 = sshll.u32 %s512, 4
          %s528 = int_to_ptr.vmem [resolvable:$true] %s527
          %533 = dma.vmem_to_hbm [thread:$0]  %s528, 128, %s526, %s509, 64, 64, 4
        $region40: #{tpu_custom_call.1} parent=27 // pred_fallthru
          _
        // Predicated region
        $region41: #{tpu_custom_call.1} parent=27 // pred_check
          %p534 = pneg %p116
        $region42: #{tpu_custom_call.1} parent=27 // pred_check_branch
          %536 = sbr.rel (%p534) target = $region44
        $region43: #{tpu_custom_call.1} parent=27 // pred_region
          %s538 = ssub.s32 32, 32
          %539 = vsyncadd %s514, %s538
          %s540 = smul.addr %s25, 32
          %s541 = scalar_lea.hbm %s3, %s540
          %s543 = sshll.u32 %s517, 4
          %s544 = int_to_ptr.vmem [resolvable:$true] %s543
          %546 = dma.vmem_to_hbm [thread:$0]  %s544, 32, %s541, %s514
        $region44: #{tpu_custom_call.1} parent=27 // pred_fallthru
          _
      $region28: #{tpu_custom_call.1} parent=5 // pred_fallthru
        _
      %p547 = scmp.le.s32.totalorder 2, %s20
      // Predicated region
      $region45: #{tpu_custom_call.1} parent=5 // pred_check
        %p548 = pneg %p547
      $region46: #{tpu_custom_call.1} parent=5 // pred_check_branch
        %550 = sbr.rel (%p548) target = $region48
      $region47: #{tpu_custom_call.1} parent=5 // pred_region
        %s551 = ssub.s32 %s20, 2
        // Predicated region
        $region49: #{tpu_custom_call.1} parent=47 // pred_check
          %p552 = pneg %p96
        $region50: #{tpu_custom_call.1} parent=47 // pred_check_branch
          %554 = sbr.rel (%p552) target = $region52
        $region51: #{tpu_custom_call.1} parent=47 // pred_region
          %s555 = sand.u32 %s81, 1
          %s556 = scalar_lea.sflag [#allocation4], %s555
          %s557 = sand.u32 %s81, 1
          %s558 = smul.addr %s557, 8
          %s559 = scalar_lea.vmem [#allocation7], %s558
          %560 = dma.done %s556, 128
        $region52: #{tpu_custom_call.1} parent=47 // pred_fallthru
          _
        // Predicated region
        $region53: #{tpu_custom_call.1} parent=47 // pred_check
          %p561 = pneg %p122
        $region54: #{tpu_custom_call.1} parent=47 // pred_check_branch
          %563 = sbr.rel (%p561) target = $region56
        $region55: #{tpu_custom_call.1} parent=47 // pred_region
          %s564 = sand.u32 %s107, 1
          %s565 = scalar_lea.sflag [#allocation9], %s564
          %s566 = sand.u32 %s107, 1
          %s567 = smul.addr %s566, 2
          %s568 = scalar_lea.vmem [#allocation8], %s567
          %569 = dma.done %s565, 32
        $region56: #{tpu_custom_call.1} parent=47 // pred_fallthru
          _
      $region48: #{tpu_custom_call.1} parent=5 // pred_fallthru
        _
    $region6: #{tpu_custom_call.1} parent=1 // loop_footer
      %s24 = sadd.s32 1, %s20
    $region7: #{tpu_custom_call.1} parent=1 // loop_footer_branch
      %19 = sbr.rel target = $region3
    $region8: #{tpu_custom_call.1} parent=1 // loop_exit
      _
    %570 = vsyncpa [#allocation3], 1
    %s571 = scalar_lea.sflag [#allocation3], 1
    %572 = vsyncpa %s571, 1
    %573 = vsyncpa [#allocation6], 1
    %574 = vsyncpa [#allocation4], 1
    %s575 = scalar_lea.sflag [#allocation4], 1
    %576 = vsyncpa %s575, 1
    %577 = vsyncpa [#allocation9], 1
    %s578 = scalar_lea.sflag [#allocation9], 1
    %579 = vsyncpa %s578, 1

</llo_original>
